<compile_context>
chip_gen: v5e
topology: v5e:2x2
jax: 0.10.0
libtpu: 0.0.40
codegen_flags: <defaults>
</compile_context>

<pallas_src>
import functools
import math

import jax
import jax.numpy as jnp
from jax.experimental import pallas as pl
from jax.experimental.pallas import tpu as pltpu


def _select_variables_kernel(seq_ref, comb_ref, gamma_ref, beta_ref, *out_refs,
                             value_size, eps, emit_out, emit_dot):
    """One grid step == one block of `block_b` batch items, fully vectorized.

    seq_ref:   (block_b, L, S)  sequence block
    comb_ref:  (block_b, 1, S)  folded current key: comb = cur @ (w_cur @ w_seq.T) / sqrt(P)
    gamma_ref: (1, 1, V)        LayerNorm gamma (VMEM-resident; unused when emit_out=False)
    beta_ref:  (1, 1, V)        LayerNorm beta  (VMEM-resident; unused when emit_out=False)
    out_refs:  [out (block_b, L, V)] if emit_out, then [dot (block_b, 1, L)] if emit_dot.
    """
    seq = seq_ref[...].astype(jnp.float32)       # (bb, L, S)
    comb = comb_ref[...].astype(jnp.float32)     # (bb, 1, S)
    bb, seq_len, _ = seq.shape

    # Lane-dense logits (L on the lane axis), batched over the block: the standard flash q.k^T
    # einsum pattern -> one MXU contraction per grid step instead of block_b small ones.
    logits_row = jnp.einsum('bqs,bks->bqk', comb, seq,
                            preferred_element_type=jnp.float32)           # (bb, 1, L)

    # One softmax over the last (lane) axis for the whole batch block (torch softmax dim=1 == L).
    m = jnp.max(logits_row, axis=-1, keepdims=True)                       # (bb, 1, 1)
    e_row = jnp.exp(logits_row - m)                                       # (bb, 1, L)
    denom = jnp.sum(e_row, axis=-1, keepdims=True)                        # (bb, 1, 1)
    if emit_dot:
        # Attention weights are handed back to the caller -> exact divide so they sum to 1.
        inv = 1.0 / denom
    else:
        inv = pl.reciprocal(denom, approx=True)                           # EUP slot, no VALU divide

    idx = 0
    if emit_out:
        out_ref = out_refs[idx]
        idx += 1
        # Column-layout logits (L on sublanes) via the mirrored einsum (same 'bqs,bks->bqk'
        # pattern with seq as q, comb as k): gives probs directly in the layout the (L, V)
        # output tile needs, reusing the lane-dense max/denominator — no lane<->sublane relayout.
        logits_col = jnp.einsum('bqs,bks->bqk', seq, comb,
                                preferred_element_type=jnp.float32)       # (bb, L, 1)
        probs_col = jnp.exp(logits_col - m) * inv                         # (bb, L, 1)
        # Faithful LayerNorm over the value axis of the expanded (row-constant) value tensor.
        value = jnp.broadcast_to(probs_col, (bb, seq_len, value_size))    # (bb, L, V)
        mean = jnp.mean(value, axis=-1, keepdims=True)
        cent = value - mean
        var = jnp.mean(cent * cent, axis=-1, keepdims=True)
        out = cent * jax.lax.rsqrt(var + eps) * gamma_ref[...] + beta_ref[...]
        out_ref[...] = out.astype(out_ref.dtype)

    if emit_dot:
        dot_ref = out_refs[idx]
        dot_ref[...] = (e_row * inv).astype(dot_ref.dtype)                # (bb, 1, L) lane-dense store


def _tensorcores_per_chip():
    """Heuristic chip-generation gate: v7x exposes 2 TensorCores per chip (grid 'parallel' axes
    shard across them); v5e/v6e expose 1 TC per JAX device.  Defaults to 1 on any doubt."""
    try:
        kind = jax.devices()[0].device_kind.lower()
    except Exception:
        return 1
    return 2 if ("v7" in kind or "7x" in kind) else 1


def _choose_batch_block(batch, *, max_block=16):
    """Largest divisor of `batch` <= max_block.  On multi-TC chips (v7x) keep >= 2 grid steps so
    both cores get work; on single-TC chips (v5e/v6e) use the fewest grid steps (each step costs
    ~0.35us of overhead and 'parallel' buys nothing there)."""
    if batch <= 1:
        return max(batch, 1)
    if _tensorcores_per_chip() >= 2:
        target = max(1, min(max_block, batch // 2))
    else:
        target = min(max_block, batch)
    for d in range(target, 0, -1):
        if batch % d == 0:
            return d
    return 1


def select_variables_forward(sequence_input, current_input, w_seq, w_cur, gamma, beta, *,
                             eps=1e-5, block_b=None, analytic_layernorm=False,
                             return_attention=False):
    """sequence_input [B, L, S], current_input [B, C] -> out [B, L, V] (+ optional dot [B, L, 1])."""
    B, L, S = sequence_input.shape
    Bc, C = current_input.shape
    assert Bc == B
    Sw, P = w_seq.shape
    Cw, Pw = w_cur.shape
    assert Sw == S and Cw == C and Pw == P
    V = int(gamma.shape[-1])
    out_dtype = sequence_input.dtype

    # ---- wrapper-side algebraic fusion (tiny ops) --------------------------------------------
    # Fold both projections and the 1/sqrt(key_size) scale:  logits[b, l] = seq[b, l, :] . comb[b, :]
    w_fold = (w_cur.astype(jnp.float32) @ w_seq.astype(jnp.float32).T) / math.sqrt(P)   # (C, S)
    comb = (current_input.astype(jnp.float32) @ w_fold).reshape(B, 1, S)                # (B, 1, S)
    gamma3 = gamma.reshape(1, 1, V).astype(jnp.float32)
    beta3 = beta.reshape(1, 1, V).astype(jnp.float32)

    # ---- analytic-LayerNorm shortcut ----------------------------------------------------------
    # `value` rows are exact broadcasts of one scalar, so the LayerNorm input has zero variance
    # and the exact output is beta.  (Valid only for this module: n_pro == 1, no masking/dropout.)
    analytic_out = None
    if analytic_layernorm:
        analytic_out = jnp.broadcast_to(beta.reshape(1, 1, V).astype(out_dtype), (B, L, V))
        if not return_attention:
            return analytic_out          # no kernel, no HBM reads of sequence_input at all

    emit_out = not analytic_layernorm
    emit_dot = return_attention

    if block_b is None:
        block_b = _choose_batch_block(B)
    assert B % block_b == 0
    grid = (B // block_b,)

    out_shapes = []
    out_specs = []
    if emit_out:
        out_shapes.append(jax.ShapeDtypeStruct((B, L, V), out_dtype))
        out_specs.append(pl.BlockSpec((block_b, L, V), lambda b: (b, 0, 0)))
    if emit_dot:
        # Lane-dense attention output (B, 1, L); reshaped to the torch (B, L, 1) layout below
        # (same element order -> free reshape).
        out_shapes.append(jax.ShapeDtypeStruct((B, 1, L), jnp.float32))
        out_specs.append(pl.BlockSpec((block_b, 1, L), lambda b: (b, 0, 0)))

    kernel = functools.partial(_select_variables_kernel, value_size=V, eps=eps,
                               emit_out=emit_out, emit_dot=emit_dot)

    # Advisory cost hint: the kernel is tiny and overhead/mem-bound.
    flops = 2 * B * L * S * (2 if emit_out else 1) + 8 * B * L + (7 * B * L * V if emit_out else 0)
    transcendentals = B * L * (2 if emit_out else 1)
    bytes_accessed = 4 * (B * L * S + B * S + (B * L * V if emit_out else 0)
                          + (B * L if emit_dot else 0) + 2 * V)

    results = pl.pallas_call(
        kernel,
        out_shape=tuple(out_shapes),
        grid=grid,
        in_specs=[
            pl.BlockSpec((block_b, L, S), lambda b: (b, 0, 0)),   # sequence block
            pl.BlockSpec((block_b, 1, S), lambda b: (b, 0, 0)),   # folded current key
            pl.BlockSpec((1, 1, V), lambda b: (0, 0, 0)),         # gamma (VMEM-resident)
            pl.BlockSpec((1, 1, V), lambda b: (0, 0, 0)),         # beta  (VMEM-resident)
        ],
        out_specs=tuple(out_specs),
        compiler_params=pltpu.CompilerParams(dimension_semantics=("parallel",)),
        cost_estimate=pl.CostEstimate(flops=flops, transcendentals=transcendentals,
                                      bytes_accessed=bytes_accessed),
    )(sequence_input, comb, gamma3, beta3)

    if not isinstance(results, (tuple, list)):
        results = (results,)

    idx = 0
    if emit_out:
        out = results[idx]
        idx += 1
    else:
        out = analytic_out
    if emit_dot:
        dot = results[idx].reshape(B, L, 1)     # (B,1,L) -> (B,L,1): contiguous, free reshape
        return out, dot
    return out


def _reference(sequence_input, current_input, w_seq, w_cur, gamma, beta, eps=1e-5):
    """Straightforward JAX port of the PyTorch forward."""
    P = w_seq.shape[1]
    query = jnp.einsum("bls,sp->blp", sequence_input, w_seq)
    key = jnp.einsum("bc,cp->bp", current_input, w_cur)
    logits = jnp.einsum("blp,bp->bl", query, key) / math.sqrt(P)
    probs = jax.nn.softmax(logits, axis=1)                          # [B, L]
    V = gamma.shape[-1]
    value = jnp.broadcast_to(probs[..., None], probs.shape + (V,))  # [B, L, V]
    mean = jnp.mean(value, axis=-1, keepdims=True)
    var = jnp.mean((value - mean) ** 2, axis=-1, keepdims=True)
    out = (value - mean) * jax.lax.rsqrt(var + eps) * gamma + beta
    return out, probs[..., None]


if __name__ == "__main__":
    # Small shapes consistent with the module's forward contract.
    B, L, S, C = 2, 8, 6, 5          # batch, input_len, seq_variables, cur_variables
    P, V = 32, 16                    # project_size (== key_size), value_size

    key = jax.random.PRNGKey(0)
    k1, k2, k3, k4, k5, k6 = jax.random.split(key, 6)

    sequence_input = jax.random.normal(k1, (B, L, S), dtype=jnp.float32)
    current_input = jax.random.normal(k2, (B, C), dtype=jnp.float32)
    w_seq = jax.random.normal(k3, (S, P), dtype=jnp.float32) * (1.0 / math.sqrt(S))
    w_cur = jax.random.normal(k4, (C, P), dtype=jnp.float32) * (1.0 / math.sqrt(C))
    # Non-trivial affine params so the test actually checks gamma/beta application.
    gamma = 1.0 + 0.1 * jax.random.normal(k5, (V,), dtype=jnp.float32)
    beta = 0.1 * jax.random.normal(k6, (V,), dtype=jnp.float32)

    ref_out, ref_dot = _reference(sequence_input, current_input, w_seq, w_cur, gamma, beta)

    # 1) Default (faithful LayerNorm) path, output only — the main production variant.
    out = select_variables_forward(sequence_input, current_input, w_seq, w_cur, gamma, beta)
    out = jax.block_until_ready(out)
    assert out.shape == (B, L, V), out.shape
    # LayerNorm input has zero variance across V; out == ~beta in any fp implementation
    # (rounding amplified by rsqrt(eps) ~= 316 bounds the impl-to-impl difference well under 2e-3).
    err_out = float(jnp.max(jnp.abs(out - ref_out)))
    assert bool(jnp.allclose(out, ref_out, atol=2e-3)), f"output mismatch, max err {err_out}"

    # 2) Faithful path + attention weights.
    out2, dot = select_variables_forward(sequence_input, current_input, w_seq, w_cur, gamma, beta,
                                         return_attention=True)
    out2 = jax.block_until_ready(out2)
    dot = jax.block_until_ready(dot)
    assert dot.shape == (B, L, 1), dot.shape
    err_dot = float(jnp.max(jnp.abs(dot - ref_dot)))
    assert bool(jnp.allclose(dot, ref_dot, atol=2e-3)), f"attention mismatch, max err {err_dot}"
    assert bool(jnp.allclose(out2, ref_out, atol=2e-3))

    # 3) Analytic LayerNorm + attention (dot-only kernel + wrapper beta broadcast).
    out_a, dot_a = select_variables_forward(sequence_input, current_input, w_seq, w_cur, gamma,
                                            beta, analytic_layernorm=True, return_attention=True)
    out_a = jax.block_until_ready(out_a)
    dot_a = jax.block_until_ready(dot_a)
    assert bool(jnp.allclose(out_a, ref_out, atol=2e-3))
    assert bool(jnp.allclose(dot_a, ref_dot, atol=2e-3))

    # 4) Analytic LayerNorm only: kernel is skipped entirely (pure broadcast of beta).
    out_b = jax.block_until_ready(
        select_variables_forward(sequence_input, current_input, w_seq, w_cur, gamma, beta,
                                 analytic_layernorm=True))
    assert bool(jnp.allclose(out_b, ref_out, atol=2e-3))

    print("KERNEL_OK")
</pallas_src>

<mosaic_0001>
module attributes {stable_mosaic.version = 11 : i64} {
  func.func @_select_variables_kernel(%arg0: i32, %arg1: memref<2x8x6xf32, #tpu.memory_space<vmem>>, %arg2: memref<2x1x6xf32, #tpu.memory_space<vmem>>, %arg3: memref<1x1x16xf32, #tpu.memory_space<vmem>>, %arg4: memref<1x1x16xf32, #tpu.memory_space<vmem>>, %arg5: memref<2x8x16xf32, #tpu.memory_space<vmem>>) attributes {dimension_semantics = [#tpu.dimension_semantics<parallel>], iteration_bounds = array<i64: 1>, scalar_prefetch = 0 : i64, scratch_operands = 0 : i64, tpu.core_type = #tpu.core_type<tc>, window_params = [{transform_indices = @transform_0, window_bounds = array<i64: 2, 8, 6>}, {transform_indices = @transform_1, window_bounds = array<i64: 2, 1, 6>}, {pipeline_mode = #tpu.pipeline_mode<synchronous>, transform_indices = @transform_2, window_bounds = array<i64: 1, 1, 16>}, {pipeline_mode = #tpu.pipeline_mode<synchronous>, transform_indices = @transform_3, window_bounds = array<i64: 1, 1, 16>}, {transform_indices = @transform_4, window_bounds = array<i64: 2, 8, 16>}]} {
    %c0 = arith.constant 0 : index
    %c0_0 = arith.constant 0 : index
    %c0_1 = arith.constant 0 : index
    %0 = vector.load %arg1[%c0, %c0_0, %c0_1] : memref<2x8x6xf32, #tpu.memory_space<vmem>>, vector<2x8x6xf32>
    %c0_2 = arith.constant 0 : index
    %c0_3 = arith.constant 0 : index
    %c0_4 = arith.constant 0 : index
    %1 = vector.load %arg2[%c0_2, %c0_3, %c0_4] : memref<2x1x6xf32, #tpu.memory_space<vmem>>, vector<2x1x6xf32>
    "tpu.trace_start"() <{level = 10 : i32, message = "bqs,bks->bqk"}> : () -> ()
    %cst = arith.constant dense<0.000000e+00> : vector<2x1x8xf32>
    %2 = tpu.matmul %1, %0, %cst {dimension_numbers = #tpu.dot_dimension_numbers<[2], [2], [1], [1], [0, 0, 0, 1, 1, 1], [0], [0]>} : vector<2x1x6xf32>, vector<2x8x6xf32>, vector<2x1x8xf32> -> vector<2x1x8xf32>
    "tpu.trace_stop"() : () -> ()
    %cst_5 = arith.constant dense<0xFF800000> : vector<2x1xf32>
    %3 = vector.multi_reduction <maximumf>, %2, %cst_5 [2] : vector<2x1x8xf32> to vector<2x1xf32>
    %4 = vector.shape_cast %3 : vector<2x1xf32> to vector<2x1x1xf32>
    %5 = vector.broadcast %4 : vector<2x1x1xf32> to vector<2x1x8xf32>
    %6 = arith.subf %2, %5 : vector<2x1x8xf32>
    %7 = math.exp %6 : vector<2x1x8xf32>
    %cst_6 = arith.constant dense<0.000000e+00> : vector<2x1xf32>
    %8 = vector.multi_reduction <add>, %7, %cst_6 [2] : vector<2x1x8xf32> to vector<2x1xf32>
    %9 = vector.shape_cast %8 : vector<2x1xf32> to vector<2x1x1xf32>
    %10 = tpu.reciprocal %9 {approx = true} : vector<2x1x1xf32> -> vector<2x1x1xf32>
    "tpu.trace_start"() <{level = 10 : i32, message = "bqs,bks->bqk"}> : () -> ()
    %cst_7 = arith.constant dense<0.000000e+00> : vector<2x8x1xf32>
    %11 = tpu.matmul %0, %1, %cst_7 {dimension_numbers = #tpu.dot_dimension_numbers<[2], [2], [1], [1], [0, 0, 0, 1, 1, 1], [0], [0]>} : vector<2x8x6xf32>, vector<2x1x6xf32>, vector<2x8x1xf32> -> vector<2x8x1xf32>
    "tpu.trace_stop"() : () -> ()
    %12 = vector.broadcast %4 : vector<2x1x1xf32> to vector<2x8x1xf32>
    %13 = arith.subf %11, %12 : vector<2x8x1xf32>
    %14 = math.exp %13 : vector<2x8x1xf32>
    %15 = vector.broadcast %10 : vector<2x1x1xf32> to vector<2x8x1xf32>
    %16 = arith.mulf %14, %15 : vector<2x8x1xf32>
    %17 = vector.shape_cast %16 : vector<2x8x1xf32> to vector<2x8x1xf32>
    %18 = vector.broadcast %17 : vector<2x8x1xf32> to vector<2x8x16xf32>
    %cst_8 = arith.constant dense<0.000000e+00> : vector<2x8xf32>
    %19 = vector.multi_reduction <add>, %18, %cst_8 [2] : vector<2x8x16xf32> to vector<2x8xf32>
    %20 = vector.shape_cast %19 : vector<2x8xf32> to vector<2x8x1xf32>
    %cst_9 = arith.constant 1.600000e+01 : f32
    %21 = vector.broadcast %cst_9 : f32 to vector<2x8x1xf32>
    %22 = arith.divf %20, %21 : vector<2x8x1xf32>
    %23 = vector.broadcast %22 : vector<2x8x1xf32> to vector<2x8x16xf32>
    %24 = arith.subf %18, %23 : vector<2x8x16xf32>
    %25 = arith.mulf %24, %24 : vector<2x8x16xf32>
    %cst_10 = arith.constant dense<0.000000e+00> : vector<2x8xf32>
    %26 = vector.multi_reduction <add>, %25, %cst_10 [2] : vector<2x8x16xf32> to vector<2x8xf32>
    %27 = vector.shape_cast %26 : vector<2x8xf32> to vector<2x8x1xf32>
    %cst_11 = arith.constant 1.600000e+01 : f32
    %28 = vector.broadcast %cst_11 : f32 to vector<2x8x1xf32>
    %29 = arith.divf %27, %28 : vector<2x8x1xf32>
    %cst_12 = arith.constant 9.99999974E-6 : f32
    %30 = vector.broadcast %cst_12 : f32 to vector<2x8x1xf32>
    %31 = arith.addf %29, %30 : vector<2x8x1xf32>
    %32 = math.rsqrt %31 : vector<2x8x1xf32>
    %33 = vector.broadcast %32 : vector<2x8x1xf32> to vector<2x8x16xf32>
    %34 = arith.mulf %24, %33 : vector<2x8x16xf32>
    %c0_13 = arith.constant 0 : index
    %c0_14 = arith.constant 0 : index
    %c0_15 = arith.constant 0 : index
    %35 = vector.load %arg3[%c0_13, %c0_14, %c0_15] : memref<1x1x16xf32, #tpu.memory_space<vmem>>, vector<1x1x16xf32>
    %36 = vector.broadcast %35 : vector<1x1x16xf32> to vector<2x8x16xf32>
    %37 = arith.mulf %34, %36 : vector<2x8x16xf32>
    %c0_16 = arith.constant 0 : index
    %c0_17 = arith.constant 0 : index
    %c0_18 = arith.constant 0 : index
    %38 = vector.load %arg4[%c0_16, %c0_17, %c0_18] : memref<1x1x16xf32, #tpu.memory_space<vmem>>, vector<1x1x16xf32>
    %39 = vector.broadcast %38 : vector<1x1x16xf32> to vector<2x8x16xf32>
    %40 = arith.addf %37, %39 : vector<2x8x16xf32>
    %c0_19 = arith.constant 0 : index
    %c0_20 = arith.constant 0 : index
    %c0_21 = arith.constant 0 : index
    %41 = vector.load %arg5[%c0_19, %c0_20, %c0_21] : memref<2x8x16xf32, #tpu.memory_space<vmem>>, vector<2x8x16xf32>
    tpu.vector_store %arg5[%c0_19, %c0_20, %c0_21], %40 {strides = array<i32>} : memref<2x8x16xf32, #tpu.memory_space<vmem>>, vector<2x8x16xf32>,
    return
  }
  func.func @transform_0(%arg0: i32) -> (i32, i32, i32) {
    %c0_i32 = arith.constant 0 : i32
    %c0_i32_0 = arith.constant 0 : i32
    %c0_i32_1 = arith.constant 0 : i32
    return %arg0, %c0_i32, %c0_i32_0 : i32, i32, i32
  }
  func.func @transform_1(%arg0: i32) -> (i32, i32, i32) {
    %c0_i32 = arith.constant 0 : i32
    %c0_i32_0 = arith.constant 0 : i32
    %c0_i32_1 = arith.constant 0 : i32
    return %arg0, %c0_i32, %c0_i32_0 : i32, i32, i32
  }
  func.func @transform_2(%arg0: i32) -> (i32, i32, i32) {
    %c0_i32 = arith.constant 0 : i32
    %c0_i32_0 = arith.constant 0 : i32
    %c0_i32_1 = arith.constant 0 : i32
    %c0_i32_2 = arith.constant 0 : i32
    return %c0_i32, %c0_i32_0, %c0_i32_1 : i32, i32, i32
  }
  func.func @transform_3(%arg0: i32) -> (i32, i32, i32) {
    %c0_i32 = arith.constant 0 : i32
    %c0_i32_0 = arith.constant 0 : i32
    %c0_i32_1 = arith.constant 0 : i32
    %c0_i32_2 = arith.constant 0 : i32
    return %c0_i32, %c0_i32_0, %c0_i32_1 : i32, i32, i32
  }
  func.func @transform_4(%arg0: i32) -> (i32, i32, i32) {
    %c0_i32 = arith.constant 0 : i32
    %c0_i32_0 = arith.constant 0 : i32
    %c0_i32_1 = arith.constant 0 : i32
    return %arg0, %c0_i32, %c0_i32_0 : i32, i32, i32
  }
}

</mosaic_0001>

<llo_original>
// kernel: tpu_custom_call.1
$region0: #{tpu_custom_call.1}
  #allocation0 [shape = 'u32[]', space=smem, size = 0x4, offset = 0x4, fixed_abs, tag = 'smem constant byte address 0x4 - core index']
  #allocation1 [shape = 'u32[72,128]{1,0:T(1,128)}', space=vmem, size = 0x9000, scoped, tag = 'internal scratch']
  %s0 = inlined_call_operand.vmem [shape: f32[2,8,6], index: 0, kind: input, shape index: {}]
  %s1 = inlined_call_operand.vmem [shape: f32[2,1,6], index: 1, kind: input, shape index: {}]
  %s2 = inlined_call_operand.vmem [shape: f32[1,1,16], index: 2, kind: input, shape index: {}]
  %s3 = inlined_call_operand.vmem [shape: f32[1,1,16], index: 3, kind: input, shape index: {}]
  %s4 = inlined_call_operand.hbm [shape: f32[2,8,16], index: 4, kind: output, shape index: {}]
  %s5 = sld [smem:[#allocation0]]
  $region26: #{tpu_custom_call.1} parent=0
    _
  %s7 = ssub.s32 1, %s5
  %s8 = scalar_select 0, %s7, %s5
  $region1: #{tpu_custom_call.1} parent=0
    #allocation2 [shape = 'u8[8192]{0}', space=vmem, size = 0x2000, scoped, tag = 'output window, operand 0, single buffered']
    #allocation3 [shape = 's32[1]{0}', space=sflag, size = 0x4, scoped, tag = 'scoped memory for tpu_custom_call.1']
    %9 = vsyncpa [#allocation3], 0
    // Predicated region
    $region2: #{tpu_custom_call.1} parent=1 // pred_check
      _
    $region3: #{tpu_custom_call.1} parent=1 // pred_check_branch
      %11 = sbr.rel (0) target = $region5
    $region4: #{tpu_custom_call.1} parent=1 // pred_region
      _
    $region5: #{tpu_custom_call.1} parent=1 // pred_fallthru
      _
    // Predicated region
    $region6: #{tpu_custom_call.1} parent=1 // pred_check
      _
    $region7: #{tpu_custom_call.1} parent=1 // pred_check_branch
      %13 = sbr.rel (0) target = $region9
    $region8: #{tpu_custom_call.1} parent=1 // pred_region
      _
    $region9: #{tpu_custom_call.1} parent=1 // pred_fallthru
      _
    // Predicated region
    $region10: #{tpu_custom_call.1} parent=1 // pred_check
      _
    $region11: #{tpu_custom_call.1} parent=1 // pred_check_branch
      %15 = sbr.rel (0) target = $region13
    $region12: #{tpu_custom_call.1} parent=1 // pred_region
      _
    $region13: #{tpu_custom_call.1} parent=1 // pred_fallthru
      _
    // Predicated region
    $region14: #{tpu_custom_call.1} parent=1 // pred_check
      _
    $region15: #{tpu_custom_call.1} parent=1 // pred_check_branch
      %17 = sbr.rel (0) target = $region17
    $region16: #{tpu_custom_call.1} parent=1 // pred_region
      _
    $region17: #{tpu_custom_call.1} parent=1 // pred_fallthru
      _
    %v18 = vld [vmem:[%s0] sm:$0xff]
    %v19 = vld [vmem:[%s0 + $0x8] sm:$0xff]
    %v20 = vld [vmem:[%s1] sm:$0x1]
    %v21 = vld [vmem:[%s1 + $0x1] sm:$0x1]
    %vm22 = vcmask 48128
    %v24 = vsel %vm22, %v20, 0
    %v27 = vsel %vm22, %v18, 0
    %29 = vmatpush.xpose.msra.mxu0 0.0
    %30 = vmatpush.xpose.msra.mxu0 0.0
    %31 = vmatpush.xpose.msra.mxu0 0.0
    %32 = vmatpush.xpose.msra.mxu0 0.0
    %33 = vmatpush.xpose.msra.mxu0 0.0
    %34 = vmatpush.xpose.msra.mxu0 0.0
    %35 = vmatpush.xpose.msra.mxu0 0.0
    %36 = vmatpush.xpose.msra.mxu0 0.0
    %37 = vmatpush.xpose.msra.mxu0 0.0
    %38 = vmatpush.xpose.msra.mxu0 0.0
    %39 = vmatpush.xpose.msra.mxu0 0.0
    %40 = vmatpush.xpose.msra.mxu0 0.0
    %41 = vmatpush.xpose.msra.mxu0 0.0
    %42 = vmatpush.xpose.msra.mxu0 0.0
    %43 = vmatpush.xpose.msra.mxu0 0.0
    %44 = vmatpush.xpose.msra.mxu0 %v27
    %45 = vmatmul.f32.gmra.mxu0 %v24
    %v46 = vpop.f32.mrf.mxu0
    %v47 = vadd.f32 0.0, %v46
    %48 = vdwg.mxu0
    %v50 = vsel %vm22, %v21, 0
    %v53 = vsel %vm22, %v19, 0
    %55 = vmatpush.xpose.msra.mxu0 0.0
    %56 = vmatpush.xpose.msra.mxu0 0.0
    %57 = vmatpush.xpose.msra.mxu0 0.0
    %58 = vmatpush.xpose.msra.mxu0 0.0
    %59 = vmatpush.xpose.msra.mxu0 0.0
    %60 = vmatpush.xpose.msra.mxu0 0.0
    %61 = vmatpush.xpose.msra.mxu0 0.0
    %62 = vmatpush.xpose.msra.mxu0 0.0
    %63 = vmatpush.xpose.msra.mxu0 0.0
    %64 = vmatpush.xpose.msra.mxu0 0.0
    %65 = vmatpush.xpose.msra.mxu0 0.0
    %66 = vmatpush.xpose.msra.mxu0 0.0
    %67 = vmatpush.xpose.msra.mxu0 0.0
    %68 = vmatpush.xpose.msra.mxu0 0.0
    %69 = vmatpush.xpose.msra.mxu0 0.0
    %70 = vmatpush.xpose.msra.mxu0 %v53
    %71 = vmatmul.f32.gmra.mxu0 %v50
    %v72 = vpop.f32.mrf.mxu0
    %v73 = vadd.f32 0.0, %v72
    %74 = vdwg.mxu0
    %vm75 = vcmask 57344
    %v76 = vsel %vm75, %v47, -inf
    %77 = vmax.xlane.f32.xlu0 %v76
    %v78 = vpop.xlane.xlu0 %77
    %v79 = vsel %vm75, %v73, -inf
    %80 = vmax.xlane.f32.xlu0 %v79
    %v81 = vpop.xlane.xlu0 %80
    %v82 = vsub.f32 %v47, %v78
    %v83 = vsub.f32 %v73, %v81
    %v84 = vmul.f32 %v82, 1.442695
    %v85 = vpow.pop %v84
    %v86 = vmul.f32 %v83, 1.442695
    %v87 = vpow.pop %v86
    %v88 = vsel %vm75, %v85, 0.0
    %89 = vadd.xlane.f32.xlu0 %v88
    %v90 = vpop.xlane.xlu0 %89
    %v91 = vsel %vm75, %v87, 0.0
    %92 = vadd.xlane.f32.xlu0 %v91
    %v93 = vpop.xlane.xlu0 %92
    %v94 = vrcp.pop %v90
    %v95 = vrcp.pop %v93
    %v96 = vperm.slane %v20, 0
    %v98 = vmul.f32 %v18, %v96
    %v99 = vsel %vm22, %v98, 0.0
    %100 = vadd.xlane.f32.xlu0 %v99
    %v101 = vpop.xlane.xlu0 %100
    %v102 = vperm.slane %v21, 0
    %v104 = vmul.f32 %v19, %v102
    %v105 = vsel %vm22, %v104, 0.0
    %106 = vadd.xlane.f32.xlu0 %v105
    %v107 = vpop.xlane.xlu0 %106
    %v108 = vperm.slane %v78, 0
    %v109 = vperm.slane %v81, 0
    %v110 = vsub.f32 %v101, %v108
    %v111 = vsub.f32 %v107, %v109
    %v112 = vmul.f32 %v110, 1.442695
    %v113 = vpow.pop %v112
    %v114 = vmul.f32 %v111, 1.442695
    %v115 = vpow.pop %v114
    %v116 = vperm.slane %v94, 0
    %v117 = vperm.slane %v95, 0
    %v118 = vmul.f32 %v113, %v116
    %v119 = vmul.f32 %v115, %v117
    %121 = vset.pattern.permute.xlu0 0
    %122 = vperm.xlu0 %121, %v118
    %v123 = vpop.permute.xlu0 %122
    %126 = vset.pattern.permute.xlu0 0
    %127 = vperm.xlu0 %126, %v119
    %v128 = vpop.permute.xlu0 %127
    %vm130 = vcmask 130048
    %v131 = vsel %vm130, %v123, 0.0
    %132 = vadd.xlane.f32.xlu0 %v131
    %v133 = vpop.xlane.xlu0 %132
    %v134 = vsel %vm130, %v128, 0.0
    %135 = vadd.xlane.f32.xlu0 %v134
    %v136 = vpop.xlane.xlu0 %135
    %v137 = vrcp.pop 16.0
    %v138 = vmul.f32 16.0, %v137
    %v139 = vsub.f32 1.0, %v138
    %v140 = vmul.f32 %v137, %v139
    %v141 = vadd.f32 %v137, %v140
    %vm142 = vweird.f32 %v137
    %v143 = vsel %vm142, %v137, %v141
    %v144 = vmul.f32 %v133, %v143
    %v145 = vmul.f32 %v136, %v143
    %v146 = vsub.f32 %v123, %v144
    %v147 = vsub.f32 %v128, %v145
    %v148 = vmul.f32 %v146, %v146
    %v149 = vmul.f32 %v147, %v147
    %v150 = vsel %vm130, %v148, 0.0
    %151 = vadd.xlane.f32.xlu0 %v150
    %v152 = vpop.xlane.xlu0 %151
    %v153 = vsel %vm130, %v149, 0.0
    %154 = vadd.xlane.f32.xlu0 %v153
    %v155 = vpop.xlane.xlu0 %154
    %v156 = vmul.f32 %v152, %v143
    %v157 = vmul.f32 %v155, %v143
    %v158 = vadd.f32 %v156, 1e-05
    %v159 = vadd.f32 %v157, 1e-05
    %v160 = vrsqrt.pop %v158
    %v161 = vmul.f32 %v160, %v158
    %v162 = vmul.f32 %v161, %v160
    %v163 = vmul.f32 0.5, %v162
    %v164 = vsub.f32 1.5, %v163
    %v165 = vmul.f32 %v160, %v164
    %vm166 = vweird.f32 %v158
    %vm167 = vweird.f32 %v160
    %vm168 = vmor %vm166, %vm167
    %v169 = vsel %vm168, %v160, %v165
    %v170 = vrsqrt.pop %v159
    %v171 = vmul.f32 %v170, %v159
    %v172 = vmul.f32 %v171, %v170
    %v173 = vmul.f32 0.5, %v172
    %v174 = vsub.f32 1.5, %v173
    %v175 = vmul.f32 %v170, %v174
    %vm176 = vweird.f32 %v159
    %vm177 = vweird.f32 %v170
    %vm178 = vmor %vm176, %vm177
    %v179 = vsel %vm178, %v170, %v175
    %v180 = vmul.f32 %v146, %v169
    %v181 = vmul.f32 %v147, %v179
    %v182 = vld [vmem:[%s2] sm:$0x1]
    %v184 = vperm.slane %v182, 0
    %v186 = vmul.f32 %v180, %v184
    %v187 = vmul.f32 %v181, %v184
    %v188 = vld [vmem:[%s3] sm:$0x1]
    %v190 = vperm.slane %v188, 0
    %v192 = vadd.f32 %v186, %v190
    %v193 = vadd.f32 %v187, %v190
    %194 = vst.msk [vmem:[#allocation2] sm:$0xff] %vm130, %v192
    %195 = vst.msk [vmem:[#allocation2 + $0x8] sm:$0xff] %vm130, %v193
    // Predicated region
    $region18: #{tpu_custom_call.1} parent=1 // pred_check
      _
    $region19: #{tpu_custom_call.1} parent=1 // pred_check_branch
      %197 = sbr.rel (0) target = $region21
    $region20: #{tpu_custom_call.1} parent=1 // pred_region
      %199 = vsyncadd [#allocation3], 0
      %s200 = sshll.u32 [#allocation2], 4
      %s201 = int_to_ptr.vmem [resolvable:$true] %s200
      %s202 = sshll.u32 %s4, 4
      %s203 = int_to_ptr.hbm [resolvable:$true] %s202
      %208 = dma.vmem_to_hbm [thread:$0]  %s201, 256, %s203, [#allocation3], 128, 128, 8
    $region21: #{tpu_custom_call.1} parent=1 // pred_fallthru
      _
    // Predicated region
    $region22: #{tpu_custom_call.1} parent=1 // pred_check
      _
    $region23: #{tpu_custom_call.1} parent=1 // pred_check_branch
      %210 = sbr.rel (0) target = $region25
    $region24: #{tpu_custom_call.1} parent=1 // pred_region
      %212 = dma.done [#allocation3], 256
    $region25: #{tpu_custom_call.1} parent=1 // pred_fallthru
      _
    %213 = vsyncpa [#allocation3], 1

</llo_original>
